<compile_context>
chip_gen: v7x
topology: tpu7x:2x2x1
jax: 0.10.0
libtpu: 0.0.40
codegen_flags: <defaults>
</compile_context>

<pallas_src>
import math

import jax
import jax.numpy as jnp
from jax.experimental import pallas as pl
from jax.experimental.pallas import tpu as pltpu

SIGMA = 25.0
LOG_SIGMA = math.log(SIGMA)
EMBED_DIM = 10          # GaussianFourierProjection(10) -> W has 5 entries
HIDDEN = 50
X_DIM = 2
OUT_DIM = 2
TWO_PI = 2.0 * math.pi


def _round_up(n, m):
    return ((n + m - 1) // m) * m


def _score_kernel(xt_ref, fw_ref, ph_ref,
                  w1x_ref, w1sc_ref, b1_ref,
                  w2_ref, b2_ref,
                  w3_ref, b3_ref,
                  o_ref):
    xt = xt_ref[...]                        # (3, TB)  rows: x0, x1, t
    x = xt[0:X_DIM, :]                      # (2, TB)
    t = xt[X_DIM:X_DIM + 1, :]              # (1, TB)

    # Gaussian Fourier projection. cos(z) == sin(z + pi/2), so both halves of
    # the embedding come out of a single (10, TB) sin call (one EUP stream).
    theta = fw_ref[...] * t * jnp.float32(TWO_PI) + ph_ref[...]     # (10, TB)
    sincos = jnp.sin(theta)                                         # (10, TB)

    # Layer 1: concat([x, sin, cos]) @ W1  ==  W1x^T @ x + W1sc^T @ sincos
    h = (jnp.dot(w1x_ref[...], x, preferred_element_type=jnp.float32)
         + jnp.dot(w1sc_ref[...], sincos, preferred_element_type=jnp.float32)
         + b1_ref[...])                                             # (50, TB)
    h = jnp.tanh(h)

    # Layer 2
    h = jnp.tanh(jnp.dot(w2_ref[...], h, preferred_element_type=jnp.float32)
                 + b2_ref[...])                                     # (50, TB)

    # Layer 3
    pred = (jnp.dot(w3_ref[...], h, preferred_element_type=jnp.float32)
            + b3_ref[...])                                          # (2, TB)

    # 1 / marginal_prob_std(t) = rsqrt((sigma^(2t) - 1) / (2*log(sigma)))
    var = (jnp.exp(t * jnp.float32(2.0 * LOG_SIGMA)) - 1.0) \
        * jnp.float32(1.0 / (2.0 * LOG_SIGMA))                      # (1, TB)
    o_ref[...] = pred * jax.lax.rsqrt(var)


def score_model_time(x, t, params, *, tb=512):
    """x: (B, 2) float32, t: (B,) float32. Returns (B, 2) float32."""
    B = x.shape[0]

    # --- pack x and t into one lane-dense (3, B) slab (batch on lanes) ---
    xt = jnp.concatenate([x.astype(jnp.float32).T,
                          t.astype(jnp.float32).reshape(1, B)], axis=0)   # (3, B)

    # --- pad batch to a multiple of the lane tile ---
    tb = min(tb, _round_up(B, 128))          # tb is always a multiple of 128
    b_pad = _round_up(B, tb)
    if b_pad != B:
        pad = jnp.concatenate(
            [jnp.zeros((X_DIM, b_pad - B), jnp.float32),
             jnp.ones((1, b_pad - B), jnp.float32)],   # t=1 keeps std finite
            axis=0)
        xt = jnp.concatenate([xt, pad], axis=1)

    # --- weights, pre-transposed to the (out_features, in_features) form ---
    fw = params["fourier_w"].astype(jnp.float32)                      # (5,)
    fw_ext = jnp.concatenate([fw, fw]).reshape(EMBED_DIM, 1)          # (10, 1)
    phase = jnp.concatenate(
        [jnp.zeros((EMBED_DIM // 2,), jnp.float32),
         jnp.full((EMBED_DIM // 2,), 0.5 * math.pi, jnp.float32)]
    ).reshape(EMBED_DIM, 1)                                           # (10, 1)

    w1 = params["w1"]                                                 # (12, 50)
    w1x_t = w1[:X_DIM, :].T                                           # (50, 2)
    w1sc_t = w1[X_DIM:, :].T                                          # (50, 10)
    b1 = params["b1"].reshape(HIDDEN, 1)
    w2_t = params["w2"].T                                             # (50, 50)
    b2 = params["b2"].reshape(HIDDEN, 1)
    w3_t = params["w3"].T                                             # (2, 50)
    b3 = params["b3"].reshape(OUT_DIM, 1)

    grid = (pl.cdiv(b_pad, tb),)

    # batch-tiled operands walk the grid; weights/biases stay resident.
    in_specs = [
        pl.BlockSpec((X_DIM + 1, tb), lambda i: (0, i)),      # xt
        pl.BlockSpec((EMBED_DIM, 1), lambda i: (0, 0)),       # fourier weights
        pl.BlockSpec((EMBED_DIM, 1), lambda i: (0, 0)),       # sin/cos phase
        pl.BlockSpec((HIDDEN, X_DIM), lambda i: (0, 0)),      # W1x^T
        pl.BlockSpec((HIDDEN, EMBED_DIM), lambda i: (0, 0)),  # W1sc^T
        pl.BlockSpec((HIDDEN, 1), lambda i: (0, 0)),          # b1
        pl.BlockSpec((HIDDEN, HIDDEN), lambda i: (0, 0)),     # W2^T
        pl.BlockSpec((HIDDEN, 1), lambda i: (0, 0)),          # b2
        pl.BlockSpec((OUT_DIM, HIDDEN), lambda i: (0, 0)),    # W3^T
        pl.BlockSpec((OUT_DIM, 1), lambda i: (0, 0)),         # b3
    ]
    out_spec = pl.BlockSpec((OUT_DIM, tb), lambda i: (0, i))

    n_weight_elems = (EMBED_DIM * 2 + HIDDEN * (X_DIM + EMBED_DIM) + HIDDEN
                      + HIDDEN * HIDDEN + HIDDEN + OUT_DIM * HIDDEN + OUT_DIM)
    cost = pl.CostEstimate(
        flops=2 * b_pad * ((X_DIM + EMBED_DIM) * HIDDEN
                           + HIDDEN * HIDDEN + HIDDEN * OUT_DIM),
        transcendentals=b_pad * (EMBED_DIM + 2 * HIDDEN + 2),
        bytes_accessed=4 * (b_pad * (X_DIM + 1 + OUT_DIM) + n_weight_elems),
    )

    out_t = pl.pallas_call(
        _score_kernel,
        out_shape=jax.ShapeDtypeStruct((OUT_DIM, b_pad), jnp.float32),
        grid=grid,
        in_specs=in_specs,
        out_specs=out_spec,
        compiler_params=pltpu.CompilerParams(
            dimension_semantics=("parallel",)),
        cost_estimate=cost,
    )(xt, fw_ext, phase, w1x_t, w1sc_t, b1, w2_t, b2, w3_t, b3)

    return out_t[:, :B].T                                             # (B, 2)


def init_params(key):
    ks = jax.random.split(key, 7)
    return {
        # GaussianFourierProjection(10, scale=1): W = randn(5) * 1
        "fourier_w": jax.random.normal(ks[0], (EMBED_DIM // 2,), jnp.float32),
        "w1": jax.random.normal(ks[1], (X_DIM + EMBED_DIM, HIDDEN), jnp.float32) * 0.3,
        "b1": jax.random.normal(ks[2], (HIDDEN,), jnp.float32) * 0.1,
        "w2": jax.random.normal(ks[3], (HIDDEN, HIDDEN), jnp.float32) * 0.15,
        "b2": jax.random.normal(ks[4], (HIDDEN,), jnp.float32) * 0.1,
        "w3": jax.random.normal(ks[5], (HIDDEN, OUT_DIM), jnp.float32) * 0.15,
        "b3": jax.random.normal(ks[6], (OUT_DIM,), jnp.float32) * 0.1,
    }


def reference_forward(x, t, params):
    """Pure-JAX reference matching the PyTorch module."""
    t_proj = t[:, None] * params["fourier_w"][None, :] * 2.0 * math.pi
    t_embed = jnp.concatenate([jnp.sin(t_proj), jnp.cos(t_proj)], axis=-1)
    h = jnp.concatenate([x, t_embed], axis=1)
    h = jnp.tanh(h @ params["w1"] + params["b1"])
    h = jnp.tanh(h @ params["w2"] + params["b2"])
    pred = h @ params["w3"] + params["b3"]
    std = jnp.sqrt((SIGMA ** (2.0 * t) - 1.0) / (2.0 * jnp.log(SIGMA)))
    return pred / std[:, None]


if __name__ == "__main__":
    key = jax.random.PRNGKey(0)
    pkey, xkey, tkey = jax.random.split(key, 3)

    params = init_params(pkey)

    B = 8
    x = jax.random.normal(xkey, (B, X_DIM), jnp.float32)
    # avoid t == 0 (std -> 0, not numerically stable per the module docstring)
    t = jax.random.uniform(tkey, (B,), jnp.float32, minval=0.05, maxval=1.0)

    out = jax.block_until_ready(score_model_time(x, t, params))

    ref = reference_forward(x, t, params)
    assert out.shape == (B, OUT_DIM)
    assert jnp.allclose(out, ref, atol=1e-4, rtol=1e-4), (out, ref)

    print("KERNEL_OK")
</pallas_src>

<mosaic_0001>
module attributes {stable_mosaic.version = 11 : i64} {
  func.func @_score_kernel(%arg0: i32, %arg1: memref<3x128xf32, #tpu.memory_space<vmem>>, %arg2: memref<10x1xf32, #tpu.memory_space<vmem>>, %arg3: memref<10x1xf32, #tpu.memory_space<vmem>>, %arg4: memref<50x2xf32, #tpu.memory_space<vmem>>, %arg5: memref<50x10xf32, #tpu.memory_space<vmem>>, %arg6: memref<50x1xf32, #tpu.memory_space<vmem>>, %arg7: memref<50x50xf32, #tpu.memory_space<vmem>>, %arg8: memref<50x1xf32, #tpu.memory_space<vmem>>, %arg9: memref<2x50xf32, #tpu.memory_space<vmem>>, %arg10: memref<2x1xf32, #tpu.memory_space<vmem>>, %arg11: memref<2x128xf32, #tpu.memory_space<vmem>>) attributes {dimension_semantics = [#tpu.dimension_semantics<parallel>], iteration_bounds = array<i64: 1>, scalar_prefetch = 0 : i64, scratch_operands = 0 : i64, tpu.core_type = #tpu.core_type<tc>, window_params = [{transform_indices = @transform_0, window_bounds = array<i64: 3, 128>}, {pipeline_mode = #tpu.pipeline_mode<synchronous>, transform_indices = @transform_1, window_bounds = array<i64: 10, 1>}, {pipeline_mode = #tpu.pipeline_mode<synchronous>, transform_indices = @transform_2, window_bounds = array<i64: 10, 1>}, {pipeline_mode = #tpu.pipeline_mode<synchronous>, transform_indices = @transform_3, window_bounds = array<i64: 50, 2>}, {pipeline_mode = #tpu.pipeline_mode<synchronous>, transform_indices = @transform_4, window_bounds = array<i64: 50, 10>}, {pipeline_mode = #tpu.pipeline_mode<synchronous>, transform_indices = @transform_5, window_bounds = array<i64: 50, 1>}, {pipeline_mode = #tpu.pipeline_mode<synchronous>, transform_indices = @transform_6, window_bounds = array<i64: 50, 50>}, {pipeline_mode = #tpu.pipeline_mode<synchronous>, transform_indices = @transform_7, window_bounds = array<i64: 50, 1>}, {pipeline_mode = #tpu.pipeline_mode<synchronous>, transform_indices = @transform_8, window_bounds = array<i64: 2, 50>}, {pipeline_mode = #tpu.pipeline_mode<synchronous>, transform_indices = @transform_9, window_bounds = array<i64: 2, 1>}, {transform_indices = @transform_10, window_bounds = array<i64: 2, 128>}]} {
    %c0 = arith.constant 0 : index
    %c0_0 = arith.constant 0 : index
    %0 = vector.load %arg1[%c0, %c0_0] : memref<3x128xf32, #tpu.memory_space<vmem>>, vector<3x128xf32>
    %1 = vector.extract_strided_slice %0 {offsets = [0, 0], sizes = [2, 128], strides = [1, 1]} : vector<3x128xf32> to vector<2x128xf32>
    %2 = vector.extract_strided_slice %0 {offsets = [2, 0], sizes = [1, 128], strides = [1, 1]} : vector<3x128xf32> to vector<1x128xf32>
    %c0_1 = arith.constant 0 : index
    %c0_2 = arith.constant 0 : index
    %3 = vector.load %arg2[%c0_1, %c0_2] : memref<10x1xf32, #tpu.memory_space<vmem>>, vector<10x1xf32>
    %4 = vector.broadcast %3 : vector<10x1xf32> to vector<10x128xf32>
    %5 = vector.broadcast %2 : vector<1x128xf32> to vector<10x128xf32>
    %6 = arith.mulf %4, %5 : vector<10x128xf32>
    %cst = arith.constant 6.28318548 : f32
    %7 = vector.broadcast %cst : f32 to vector<10x128xf32>
    %8 = arith.mulf %6, %7 : vector<10x128xf32>
    %c0_3 = arith.constant 0 : index
    %c0_4 = arith.constant 0 : index
    %9 = vector.load %arg3[%c0_3, %c0_4] : memref<10x1xf32, #tpu.memory_space<vmem>>, vector<10x1xf32>
    %10 = vector.broadcast %9 : vector<10x1xf32> to vector<10x128xf32>
    %11 = arith.addf %8, %10 : vector<10x128xf32>
    %12 = math.sin %11 : vector<10x128xf32>
    %c0_5 = arith.constant 0 : index
    %c0_6 = arith.constant 0 : index
    %13 = vector.load %arg4[%c0_5, %c0_6] : memref<50x2xf32, #tpu.memory_space<vmem>>, vector<50x2xf32>
    %cst_7 = arith.constant dense<0.000000e+00> : vector<50x128xf32>
    %14 = tpu.matmul %13, %1, %cst_7 {dimension_numbers = #tpu.dot_dimension_numbers<[1], [0], [0], [1], [0, 0, 1, 1], [], []>} : vector<50x2xf32>, vector<2x128xf32>, vector<50x128xf32> -> vector<50x128xf32>
    %c0_8 = arith.constant 0 : index
    %c0_9 = arith.constant 0 : index
    %15 = vector.load %arg5[%c0_8, %c0_9] : memref<50x10xf32, #tpu.memory_space<vmem>>, vector<50x10xf32>
    %cst_10 = arith.constant dense<0.000000e+00> : vector<50x128xf32>
    %16 = tpu.matmul %15, %12, %cst_10 {dimension_numbers = #tpu.dot_dimension_numbers<[1], [0], [0], [1], [0, 0, 1, 1], [], []>} : vector<50x10xf32>, vector<10x128xf32>, vector<50x128xf32> -> vector<50x128xf32>
    %17 = arith.addf %14, %16 : vector<50x128xf32>
    %c0_11 = arith.constant 0 : index
    %c0_12 = arith.constant 0 : index
    %18 = vector.load %arg6[%c0_11, %c0_12] : memref<50x1xf32, #tpu.memory_space<vmem>>, vector<50x1xf32>
    %19 = vector.broadcast %18 : vector<50x1xf32> to vector<50x128xf32>
    %20 = arith.addf %17, %19 : vector<50x128xf32>
    %21 = math.tanh %20 : vector<50x128xf32>
    %c0_13 = arith.constant 0 : index
    %c0_14 = arith.constant 0 : index
    %22 = vector.load %arg7[%c0_13, %c0_14] : memref<50x50xf32, #tpu.memory_space<vmem>>, vector<50x50xf32>
    %cst_15 = arith.constant dense<0.000000e+00> : vector<50x128xf32>
    %23 = tpu.matmul %22, %21, %cst_15 {dimension_numbers = #tpu.dot_dimension_numbers<[1], [0], [0], [1], [0, 0, 1, 1], [], []>} : vector<50x50xf32>, vector<50x128xf32>, vector<50x128xf32> -> vector<50x128xf32>
    %c0_16 = arith.constant 0 : index
    %c0_17 = arith.constant 0 : index
    %24 = vector.load %arg8[%c0_16, %c0_17] : memref<50x1xf32, #tpu.memory_space<vmem>>, vector<50x1xf32>
    %25 = vector.broadcast %24 : vector<50x1xf32> to vector<50x128xf32>
    %26 = arith.addf %23, %25 : vector<50x128xf32>
    %27 = math.tanh %26 : vector<50x128xf32>
    %c0_18 = arith.constant 0 : index
    %c0_19 = arith.constant 0 : index
    %28 = vector.load %arg9[%c0_18, %c0_19] : memref<2x50xf32, #tpu.memory_space<vmem>>, vector<2x50xf32>
    %cst_20 = arith.constant dense<0.000000e+00> : vector<2x128xf32>
    %29 = tpu.matmul %28, %27, %cst_20 {dimension_numbers = #tpu.dot_dimension_numbers<[1], [0], [0], [1], [0, 0, 1, 1], [], []>} : vector<2x50xf32>, vector<50x128xf32>, vector<2x128xf32> -> vector<2x128xf32>
    %c0_21 = arith.constant 0 : index
    %c0_22 = arith.constant 0 : index
    %30 = vector.load %arg10[%c0_21, %c0_22] : memref<2x1xf32, #tpu.memory_space<vmem>>, vector<2x1xf32>
    %31 = vector.broadcast %30 : vector<2x1xf32> to vector<2x128xf32>
    %32 = arith.addf %29, %31 : vector<2x128xf32>
    %cst_23 = arith.constant 6.43775177 : f32
    %33 = vector.broadcast %cst_23 : f32 to vector<1x128xf32>
    %34 = arith.mulf %2, %33 : vector<1x128xf32>
    %35 = math.exp %34 : vector<1x128xf32>
    %cst_24 = arith.constant 1.000000e+00 : f32
    %36 = vector.broadcast %cst_24 : f32 to vector<1x128xf32>
    %37 = arith.subf %35, %36 : vector<1x128xf32>
    %cst_25 = arith.constant 0.155333728 : f32
    %38 = vector.broadcast %cst_25 : f32 to vector<1x128xf32>
    %39 = arith.mulf %37, %38 : vector<1x128xf32>
    %40 = math.rsqrt %39 : vector<1x128xf32>
    %41 = vector.broadcast %40 : vector<1x128xf32> to vector<2x128xf32>
    %42 = arith.mulf %32, %41 : vector<2x128xf32>
    %c0_26 = arith.constant 0 : index
    %c0_27 = arith.constant 0 : index
    %43 = vector.load %arg11[%c0_26, %c0_27] : memref<2x128xf32, #tpu.memory_space<vmem>>, vector<2x128xf32>
    tpu.vector_store %arg11[%c0_26, %c0_27], %42 {strides = array<i32>} : memref<2x128xf32, #tpu.memory_space<vmem>>, vector<2x128xf32>,
    return
  }
  func.func @transform_0(%arg0: i32) -> (i32, i32) {
    %c0_i32 = arith.constant 0 : i32
    %c0_i32_0 = arith.constant 0 : i32
    return %c0_i32, %arg0 : i32, i32
  }
  func.func @transform_1(%arg0: i32) -> (i32, i32) {
    %c0_i32 = arith.constant 0 : i32
    %c0_i32_0 = arith.constant 0 : i32
    %c0_i32_1 = arith.constant 0 : i32
    return %c0_i32, %c0_i32_0 : i32, i32
  }
  func.func @transform_2(%arg0: i32) -> (i32, i32) {
    %c0_i32 = arith.constant 0 : i32
    %c0_i32_0 = arith.constant 0 : i32
    %c0_i32_1 = arith.constant 0 : i32
    return %c0_i32, %c0_i32_0 : i32, i32
  }
  func.func @transform_3(%arg0: i32) -> (i32, i32) {
    %c0_i32 = arith.constant 0 : i32
    %c0_i32_0 = arith.constant 0 : i32
    %c0_i32_1 = arith.constant 0 : i32
    return %c0_i32, %c0_i32_0 : i32, i32
  }
  func.func @transform_4(%arg0: i32) -> (i32, i32) {
    %c0_i32 = arith.constant 0 : i32
    %c0_i32_0 = arith.constant 0 : i32
    %c0_i32_1 = arith.constant 0 : i32
    return %c0_i32, %c0_i32_0 : i32, i32
  }
  func.func @transform_5(%arg0: i32) -> (i32, i32) {
    %c0_i32 = arith.constant 0 : i32
    %c0_i32_0 = arith.constant 0 : i32
    %c0_i32_1 = arith.constant 0 : i32
    return %c0_i32, %c0_i32_0 : i32, i32
  }
  func.func @transform_6(%arg0: i32) -> (i32, i32) {
    %c0_i32 = arith.constant 0 : i32
    %c0_i32_0 = arith.constant 0 : i32
    %c0_i32_1 = arith.constant 0 : i32
    return %c0_i32, %c0_i32_0 : i32, i32
  }
  func.func @transform_7(%arg0: i32) -> (i32, i32) {
    %c0_i32 = arith.constant 0 : i32
    %c0_i32_0 = arith.constant 0 : i32
    %c0_i32_1 = arith.constant 0 : i32
    return %c0_i32, %c0_i32_0 : i32, i32
  }
  func.func @transform_8(%arg0: i32) -> (i32, i32) {
    %c0_i32 = arith.constant 0 : i32
    %c0_i32_0 = arith.constant 0 : i32
    %c0_i32_1 = arith.constant 0 : i32
    return %c0_i32, %c0_i32_0 : i32, i32
  }
  func.func @transform_9(%arg0: i32) -> (i32, i32) {
    %c0_i32 = arith.constant 0 : i32
    %c0_i32_0 = arith.constant 0 : i32
    %c0_i32_1 = arith.constant 0 : i32
    return %c0_i32, %c0_i32_0 : i32, i32
  }
  func.func @transform_10(%arg0: i32) -> (i32, i32) {
    %c0_i32 = arith.constant 0 : i32
    %c0_i32_0 = arith.constant 0 : i32
    return %c0_i32, %arg0 : i32, i32
  }
}

</mosaic_0001>

<llo_original>
// kernel: tpu_custom_call.1
$region0: #{tpu_custom_call.1}
  #allocation0 [shape = 'u32[]', space=smem, size = 0x4, offset = 0x4, fixed_abs, tag = 'smem constant byte address 0x4 - core index']
  #allocation1 [shape = 'u32[144,128]{1,0:T(1,128)}', space=vmem, size = 0x12000, scoped, tag = 'internal scratch']
  %s0 = inlined_call_operand.vmem [shape: f32[3,128], index: 0, kind: input, shape index: {}]
  %s1 = inlined_call_operand.vmem [shape: f32[10,1], index: 1, kind: input, shape index: {}]
  %s2 = inlined_call_operand.vmem [shape: f32[10,1], index: 2, kind: input, shape index: {}]
  %s3 = inlined_call_operand.vmem [shape: f32[50,2], index: 3, kind: input, shape index: {}]
  %s4 = inlined_call_operand.vmem [shape: f32[50,10], index: 4, kind: input, shape index: {}]
  %s5 = inlined_call_operand.vmem [shape: f32[50,1], index: 5, kind: input, shape index: {}]
  %s6 = inlined_call_operand.vmem [shape: f32[50,50], index: 6, kind: input, shape index: {}]
  %s7 = inlined_call_operand.vmem [shape: f32[50,1], index: 7, kind: input, shape index: {}]
  %s8 = inlined_call_operand.vmem [shape: f32[2,50], index: 8, kind: input, shape index: {}]
  %s9 = inlined_call_operand.vmem [shape: f32[2,1], index: 9, kind: input, shape index: {}]
  %s10 = inlined_call_operand.hbm [shape: f32[2,128], index: 10, kind: output, shape index: {}]
  %s11 = sld [smem:[#allocation0]]
  $region50: #{tpu_custom_call.1} parent=0
    _
  %s13 = ssub.s32 1, %s11
  %s14 = scalar_select 0, %s13, %s11
  $region1: #{tpu_custom_call.1} parent=0
    #allocation2 [shape = 'u8[1024]{0}', space=vmem, size = 0x400, scoped, tag = 'output window, operand 0, single buffered']
    #allocation3 [shape = 's32[1]{0}', space=sflag, size = 0x4, scoped, tag = 'scoped memory for tpu_custom_call.1']
    %15 = vsyncpa [#allocation3], 0
    // Predicated region
    $region2: #{tpu_custom_call.1} parent=1 // pred_check
      _
    $region3: #{tpu_custom_call.1} parent=1 // pred_check_branch
      %17 = sbr.rel (0) target = $region5
    $region4: #{tpu_custom_call.1} parent=1 // pred_region
      _
    $region5: #{tpu_custom_call.1} parent=1 // pred_fallthru
      _
    // Predicated region
    $region6: #{tpu_custom_call.1} parent=1 // pred_check
      _
    $region7: #{tpu_custom_call.1} parent=1 // pred_check_branch
      %19 = sbr.rel (0) target = $region9
    $region8: #{tpu_custom_call.1} parent=1 // pred_region
      _
    $region9: #{tpu_custom_call.1} parent=1 // pred_fallthru
      _
    // Predicated region
    $region10: #{tpu_custom_call.1} parent=1 // pred_check
      _
    $region11: #{tpu_custom_call.1} parent=1 // pred_check_branch
      %21 = sbr.rel (0) target = $region13
    $region12: #{tpu_custom_call.1} parent=1 // pred_region
      _
    $region13: #{tpu_custom_call.1} parent=1 // pred_fallthru
      _
    // Predicated region
    $region14: #{tpu_custom_call.1} parent=1 // pred_check
      _
    $region15: #{tpu_custom_call.1} parent=1 // pred_check_branch
      %23 = sbr.rel (0) target = $region17
    $region16: #{tpu_custom_call.1} parent=1 // pred_region
      _
    $region17: #{tpu_custom_call.1} parent=1 // pred_fallthru
      _
    // Predicated region
    $region18: #{tpu_custom_call.1} parent=1 // pred_check
      _
    $region19: #{tpu_custom_call.1} parent=1 // pred_check_branch
      %25 = sbr.rel (0) target = $region21
    $region20: #{tpu_custom_call.1} parent=1 // pred_region
      _
    $region21: #{tpu_custom_call.1} parent=1 // pred_fallthru
      _
    // Predicated region
    $region22: #{tpu_custom_call.1} parent=1 // pred_check
      _
    $region23: #{tpu_custom_call.1} parent=1 // pred_check_branch
      %27 = sbr.rel (0) target = $region25
    $region24: #{tpu_custom_call.1} parent=1 // pred_region
      _
    $region25: #{tpu_custom_call.1} parent=1 // pred_fallthru
      _
    // Predicated region
    $region26: #{tpu_custom_call.1} parent=1 // pred_check
      _
    $region27: #{tpu_custom_call.1} parent=1 // pred_check_branch
      %29 = sbr.rel (0) target = $region29
    $region28: #{tpu_custom_call.1} parent=1 // pred_region
      _
    $region29: #{tpu_custom_call.1} parent=1 // pred_fallthru
      _
    // Predicated region
    $region30: #{tpu_custom_call.1} parent=1 // pred_check
      _
    $region31: #{tpu_custom_call.1} parent=1 // pred_check_branch
      %31 = sbr.rel (0) target = $region33
    $region32: #{tpu_custom_call.1} parent=1 // pred_region
      _
    $region33: #{tpu_custom_call.1} parent=1 // pred_fallthru
      _
    // Predicated region
    $region34: #{tpu_custom_call.1} parent=1 // pred_check
      _
    $region35: #{tpu_custom_call.1} parent=1 // pred_check_branch
      %33 = sbr.rel (0) target = $region37
    $region36: #{tpu_custom_call.1} parent=1 // pred_region
      _
    $region37: #{tpu_custom_call.1} parent=1 // pred_fallthru
      _
    // Predicated region
    $region38: #{tpu_custom_call.1} parent=1 // pred_check
      _
    $region39: #{tpu_custom_call.1} parent=1 // pred_check_branch
      %35 = sbr.rel (0) target = $region41
    $region40: #{tpu_custom_call.1} parent=1 // pred_region
      _
    $region41: #{tpu_custom_call.1} parent=1 // pred_fallthru
      _
    %v36 = vld [vmem:[%s0] sm:$0x7]
    %v37 = vld [vmem:[%s1] sm:$0xff]
    %v38 = vld [vmem:[%s1 + $0x8] sm:$0x3]
    %40 = vset.pattern.permute.xlu0 0
    %41 = vperm.xlu0 %40, %v37
    %v42 = vpop.permute.xlu0 %41
    %45 = vset.pattern.permute.xlu0 0
    %46 = vperm.xlu0 %45, %v38
    %v47 = vpop.permute.xlu0 %46
    %v49 = vlaneseq
    %v50 = vshrl.u32 %v49, 7
    %v51 = vsub.s32 2, %v50
    %v52 = vrot.slane %v36, %v51
    %v53 = vmul.f32 %v42, %v52
    %v54 = vmul.f32 %v47, %v52
    %v55 = vmul.f32 %v53, 6.2831855
    %v56 = vmul.f32 %v54, 6.2831855
    %v57 = vld [vmem:[%s2] sm:$0xff]
    %v58 = vld [vmem:[%s2 + $0x8] sm:$0x3]
    %60 = vset.pattern.permute.xlu0 0
    %61 = vperm.xlu0 %60, %v57
    %v62 = vpop.permute.xlu0 %61
    %65 = vset.pattern.permute.xlu0 0
    %66 = vperm.xlu0 %65, %v58
    %v67 = vpop.permute.xlu0 %66
    %v69 = vadd.f32 %v55, %v62
    %v70 = vadd.f32 %v56, %v67
    %v71 = vand.u32 2147483647, %v69
    %vm72 = vcmp.le.f32.partialorder %v71, 0.7853982
    %vm73 = vcmp.lt.s32.totalorder %v69, 0
    %v74 = vand.u32 %v69, 2139095040
    %v75 = vshrl.u32 %v74, 23
    %v76 = vsub.s32 %v75, 127
    %v77 = vand.u32 2147483647, %v69
    %v78 = vand.u32 %v77, 8388607
    %v79 = vor.u32 %v78, 8388608
    %v80 = vsub.s32 0, %v79
    %v81 = vadd.s32 %v76, 1
    %vm82 = vcmp.gt.s32.totalorder %v81, 0
    %v83 = vsel %vm82, %v81, 0
    %v84 = vshrl.u32 %v83, 5
    %v85 = vand.u32 %v83, 31
    %v86 = vsub.s32 32, %v85
    %v87 = vshrl.u32 683565275, %v86
    %v88 = vshll.u32 683565275, %v85
    %v89 = vshrl.u32 2475754826, %v86
    %v90 = vor.u32 %v88, %v89
    %v91 = vshll.u32 2475754826, %v85
    %v92 = vshrl.u32 2131351028, %v86
    %v93 = vor.u32 %v91, %v92
    %v94 = vshll.u32 2131351028, %v85
    %v95 = vshrl.u32 2102212464, %v86
    %v96 = vor.u32 %v94, %v95
    %v97 = vshll.u32 2102212464, %v85
    %v98 = vshrl.u32 920167782, %v86
    %v99 = vor.u32 %v97, %v98
    %v100 = vshll.u32 920167782, %v85
    %v101 = vshrl.u32 1326507024, %v86
    %v102 = vor.u32 %v100, %v101
    %vm103 = vcmp.lt.s32.totalorder %v84, 1
    %vm104 = vcmp.lt.s32.totalorder %v84, 2
    %vm105 = vcmp.lt.s32.totalorder %v84, 3
    %vm106 = vcmp.lt.s32.totalorder %v84, 4
    %v107 = vsel %vm103, %v87, %v90
    %v108 = vsel %vm106, %v96, 2102212464
    %v109 = vsel %vm105, %v93, %v108
    %v110 = vsel %vm104, %v107, %v109
    %v111 = vsel %vm103, %v90, %v93
    %v112 = vsel %vm106, %v99, 920167782
    %v113 = vsel %vm105, %v96, %v112
    %v114 = vsel %vm104, %v111, %v113
    %v115 = vsel %vm103, %v93, %v96
    %v116 = vsel %vm106, %v102, 1326507024
    %v117 = vsel %vm105, %v99, %v116
    %v118 = vsel %vm104, %v115, %v117
    %v119 = vshll.u32 %v79, 8
    %v120 = vmul.u32.u64.compose %v119, %v118
    %v121 = vextract.low.u32 %v120
    %v122 = vextract.high.u32 %v120
    %v123 = vmul.u32.u64.compose %v119, %v114
    %v124 = vextract.low.u32 %v123
    %v125 = vextract.high.u32 %v123
    %v126 = vmul.u32 %v119, %v110
    %v127 = vadd.s32 %v122, %v124
    %vm128 = vc.u32 %v122, %v124
    %v129 = vadd.s32 %v125, 1
    %v130 = vsel %vm128, %v129, %v125
    %v131 = vadd.s32 %v126, %v130
    %v132 = vadd.s32 %v131, 536870912
    %v133 = vshrl.u32 %v132, 30
    %v134 = vshll.u32 %v133, 30
    %v135 = vsub.s32 %v131, %v134
    %vm136 = vcmp.lt.s32.totalorder %v135, 0
    %v137 = vsub.s32 0, %v135
    %v138 = vsel %vm136, %v137, %v135
    %v139 = vclz %v138
    %v140 = vsub.s32 %v139, 2
    %vm141 = vcmp.gt.s32.totalorder 0, %v140
    %v142 = vsel %vm141, 0, %v140
    %v143 = vsub.s32 32, %v142
    %v144 = vshll.u32 %v135, %v142
    %v145 = vshrl.u32 %v127, %v143
    %v146 = vor.u32 %v144, %v145
    %v147 = vsub.s32 4294967266, %v142
    %v148 = vadd.s32 %v147, 127
    %v149 = vshll.u32 %v148, 23
    %v150 = vor.u32 4788187, %v149
    %v151 = vand.u32 2147483647, %v150
    %v153 = vcvt.s32.f32 %v146
    %v154 = vmul.f32 %v153, %v151
    %v155 = vxor.u32 %v154, 2147483648
    %v156 = vsel %vm73, %v155, %v154
    %v157 = vsub.s32 4, %v133
    %v158 = vsel %vm73, %v157, %v133
    %v159 = vsel %vm72, %v69, %v156
    %v160 = vsel %vm72, 0, %v158
    %v161 = vcosq.f32.pop %v159
    %v162 = vsinq.f32.pop %v159
    %vm163 = vweird.f32 %v69
    %v164 = vadd.s32 %v160, 3
    %v165 = vand.u32 %v164, 3
    %vm166 = vcmp.lt.s32.totalorder %v165, 2
    %vm167 = vcmp.eq.s32.totalorder %v165, 0
    %v168 = vxor.u32 %v162, 2147483648
    %v169 = vsel %vm167, %v161, %v168
    %vm170 = vcmp.eq.s32.totalorder %v165, 2
    %v171 = vxor.u32 %v161, 2147483648
    %v172 = vsel %vm170, %v171, %v162
    %v173 = vsel %vm166, %v169, %v172
    %v174 = vsel %vm163, nan, %v173
    %v175 = vand.u32 2147483647, %v70
    %vm176 = vcmp.le.f32.partialorder %v175, 0.7853982
    %vm177 = vcmp.lt.s32.totalorder %v70, 0
    %v178 = vand.u32 %v70, 2139095040
    %v179 = vshrl.u32 %v178, 23
    %v180 = vsub.s32 %v179, 127
    %v181 = vand.u32 2147483647, %v70
    %v182 = vand.u32 %v181, 8388607
    %v183 = vor.u32 %v182, 8388608
    %v184 = vsub.s32 0, %v183
    %v185 = vadd.s32 %v180, 1
    %vm186 = vcmp.gt.s32.totalorder %v185, 0
    %v187 = vsel %vm186, %v185, 0
    %v188 = vshrl.u32 %v187, 5
    %v189 = vand.u32 %v187, 31
    %v190 = vsub.s32 32, %v189
    %v191 = vshrl.u32 683565275, %v190
    %v192 = vshll.u32 683565275, %v189
    %v193 = vshrl.u32 2475754826, %v190
    %v194 = vor.u32 %v192, %v193
    %v195 = vshll.u32 2475754826, %v189
    %v196 = vshrl.u32 2131351028, %v190
    %v197 = vor.u32 %v195, %v196
    %v198 = vshll.u32 2131351028, %v189
    %v199 = vshrl.u32 2102212464, %v190
    %v200 = vor.u32 %v198, %v199
    %v201 = vshll.u32 2102212464, %v189
    %v202 = vshrl.u32 920167782, %v190
    %v203 = vor.u32 %v201, %v202
    %v204 = vshll.u32 920167782, %v189
    %v205 = vshrl.u32 1326507024, %v190
    %v206 = vor.u32 %v204, %v205
    %vm207 = vcmp.lt.s32.totalorder %v188, 1
    %vm208 = vcmp.lt.s32.totalorder %v188, 2
    %vm209 = vcmp.lt.s32.totalorder %v188, 3
    %vm210 = vcmp.lt.s32.totalorder %v188, 4
    %v211 = vsel %vm207, %v191, %v194
    %v212 = vsel %vm210, %v200, 2102212464
    %v213 = vsel %vm209, %v197, %v212
    %v214 = vsel %vm208, %v211, %v213
    %v215 = vsel %vm207, %v194, %v197
    %v216 = vsel %vm210, %v203, 920167782
    %v217 = vsel %vm209, %v200, %v216
    %v218 = vsel %vm208, %v215, %v217
    %v219 = vsel %vm207, %v197, %v200
    %v220 = vsel %vm210, %v206, 1326507024
    %v221 = vsel %vm209, %v203, %v220
    %v222 = vsel %vm208, %v219, %v221
    %v223 = vshll.u32 %v183, 8
    %v224 = vmul.u32.u64.compose %v223, %v222
    %v225 = vextract.low.u32 %v224
    %v226 = vextract.high.u32 %v224
    %v227 = vmul.u32.u64.compose %v223, %v218
    %v228 = vextract.low.u32 %v227
    %v229 = vextract.high.u32 %v227
    %v230 = vmul.u32 %v223, %v214
    %v231 = vadd.s32 %v226, %v228
    %vm232 = vc.u32 %v226, %v228
    %v233 = vadd.s32 %v229, 1
    %v234 = vsel %vm232, %v233, %v229
    %v235 = vadd.s32 %v230, %v234
    %v236 = vadd.s32 %v235, 536870912
    %v237 = vshrl.u32 %v236, 30
    %v238 = vshll.u32 %v237, 30
    %v239 = vsub.s32 %v235, %v238
    %vm240 = vcmp.lt.s32.totalorder %v239, 0
    %v241 = vsub.s32 0, %v239
    %v242 = vsel %vm240, %v241, %v239
    %v243 = vclz %v242
    %v244 = vsub.s32 %v243, 2
    %vm245 = vcmp.gt.s32.totalorder 0, %v244
    %v246 = vsel %vm245, 0, %v244
    %v247 = vsub.s32 32, %v246
    %v248 = vshll.u32 %v239, %v246
    %v249 = vshrl.u32 %v231, %v247
    %v250 = vor.u32 %v248, %v249
    %v251 = vsub.s32 4294967266, %v246
    %v252 = vadd.s32 %v251, 127
    %v253 = vshll.u32 %v252, 23
    %v254 = vor.u32 4788187, %v253
    %v255 = vand.u32 2147483647, %v254
    %v257 = vcvt.s32.f32 %v250
    %v258 = vmul.f32 %v257, %v255
    %v259 = vxor.u32 %v258, 2147483648
    %v260 = vsel %vm177, %v259, %v258
    %v261 = vsub.s32 4, %v237
    %v262 = vsel %vm177, %v261, %v237
    %v263 = vsel %vm176, %v70, %v260
    %v264 = vsel %vm176, 0, %v262
    %v265 = vcosq.f32.pop %v263
    %v266 = vsinq.f32.pop %v263
    %vm267 = vweird.f32 %v70
    %v268 = vadd.s32 %v264, 3
    %v269 = vand.u32 %v268, 3
    %vm270 = vcmp.lt.s32.totalorder %v269, 2
    %vm271 = vcmp.eq.s32.totalorder %v269, 0
    %v272 = vxor.u32 %v266, 2147483648
    %v273 = vsel %vm271, %v265, %v272
    %vm274 = vcmp.eq.s32.totalorder %v269, 2
    %v275 = vxor.u32 %v265, 2147483648
    %v276 = vsel %vm274, %v275, %v266
    %v277 = vsel %vm270, %v273, %v276
    %v278 = vsel %vm267, nan, %v277
    %v279 = vld [vmem:[%s3] sm:$0xff]
    %v280 = vld [vmem:[%s3 + $0x8] sm:$0xff]
    %v281 = vld [vmem:[%s3 + $0x10] sm:$0xff]
    %v282 = vld [vmem:[%s3 + $0x18] sm:$0xff]
    %v283 = vld [vmem:[%s3 + $0x20] sm:$0xff]
    %v284 = vld [vmem:[%s3 + $0x28] sm:$0xff]
    %v285 = vld [vmem:[%s3 + $0x30] sm:$0x3]
    %v286 = vld [vmem:[%s4] sm:$0xff]
    %v287 = vld [vmem:[%s4 + $0x8] sm:$0xff]
    %v288 = vld [vmem:[%s4 + $0x10] sm:$0xff]
    %v289 = vld [vmem:[%s4 + $0x18] sm:$0xff]
    %v290 = vld [vmem:[%s4 + $0x20] sm:$0xff]
    %v291 = vld [vmem:[%s4 + $0x28] sm:$0xff]
    %v292 = vld [vmem:[%s4 + $0x30] sm:$0x3]
    %vm293 = vcmask 80896
    %v295 = vsel %vm293, %v286, 0
    %v298 = vsel %vm293, %v287, 0
    %v301 = vsel %vm293, %v288, 0
    %v304 = vsel %vm293, %v289, 0
    %v307 = vsel %vm293, %v290, 0
    %v310 = vsel %vm293, %v291, 0
    %v313 = vsel %vm293, %v292, 0
    %vm315 = vcmask 1041408
    %v317 = vsel %vm315, %v278, 0
    %319 = vmatprep.subr.mxu0 0.0
    %320 = vmatpush1.msra.mxu0 %v174
    %321 = vmatprep.subr.mxu0 0.0
    %322 = vmatpush1.msra.mxu0 %v317
    %323 = vmatprep.subr.mxu0 0.0
    %324 = vmatpush1.msra.mxu0 0.0
    %325 = vmatprep.subr.mxu0 0.0
    %326 = vmatpush1.msra.mxu0 0.0
    %327 = vmatprep.subr.mxu0 0.0
    %328 = vmatpush1.msra.mxu0 0.0
    %329 = vmatprep.subr.mxu0 0.0
    %330 = vmatpush1.msra.mxu0 0.0
    %331 = vmatprep.subr.mxu0 0.0
    %332 = vmatpush1.msra.mxu0 0.0
    %333 = vmatprep.subr.mxu0 0.0
    %334 = vmatpush1.msra.mxu0 0.0
    %335 = vmatprep.subr.mxu0 0.0
    %336 = vmatpush1.msra.mxu0 0.0
    %337 = vmatprep.subr.mxu0 0.0
    %338 = vmatpush1.msra.mxu0 0.0
    %339 = vmatprep.subr.mxu0 0.0
    %340 = vmatpush1.msra.mxu0 0.0
    %341 = vmatprep.subr.mxu0 0.0
    %342 = vmatpush1.msra.mxu0 0.0
    %343 = vmatprep.subr.mxu0 0.0
    %344 = vmatpush1.msra.mxu0 0.0
    %345 = vmatprep.subr.mxu0 0.0
    %346 = vmatpush1.msra.mxu0 0.0
    %347 = vmatprep.subr.mxu0 0.0
    %348 = vmatpush1.msra.mxu0 0.0
    %349 = vmatprep.subr.mxu0 0.0
    %350 = vmatpush1.msra.mxu0 0.0
    %351 = vmatprep.subr.mxu0 0.0
    %352 = vmatpush1.msra.mxu0 0.0
    %353 = vmatprep.subr.mxu0 0.0
    %354 = vmatpush1.msra.mxu0 0.0
    %355 = vmatprep.subr.mxu0 0.0
    %356 = vmatpush1.msra.mxu0 0.0
    %357 = vmatprep.subr.mxu0 0.0
    %358 = vmatpush1.msra.mxu0 0.0
    %359 = vmatprep.subr.mxu0 0.0
    %360 = vmatpush1.msra.mxu0 0.0
    %361 = vmatprep.subr.mxu0 0.0
    %362 = vmatpush1.msra.mxu0 0.0
    %363 = vmatprep.subr.mxu0 0.0
    %364 = vmatpush1.msra.mxu0 0.0
    %365 = vmatprep.subr.mxu0 0.0
    %366 = vmatpush1.msra.mxu0 0.0
    %367 = vmatprep.subr.mxu0 0.0
    %368 = vmatpush1.msra.mxu0 0.0
    %369 = vmatprep.subr.mxu0 0.0
    %370 = vmatpush1.msra.mxu0 0.0
    %371 = vmatprep.subr.mxu0 0.0
    %372 = vmatpush1.msra.mxu0 0.0
    %373 = vmatprep.subr.mxu0 0.0
    %374 = vmatpush1.msra.mxu0 0.0
    %375 = vmatprep.subr.mxu0 0.0
    %376 = vmatpush1.msra.mxu0 0.0
    %377 = vmatprep.subr.mxu0 0.0
    %378 = vmatpush1.msra.mxu0 0.0
    %379 = vmatprep.subr.mxu0 0.0
    %380 = vmatpush1.msra.mxu0 0.0
    %381 = vmatprep.subr.mxu0 0.0
    %382 = vmatpush1.msra.mxu0 0.0
    %383 = vmatprep.mubr.f32.mxu0 0.0
    %384 = vmatmul.mubr.f32.gmra.mrb[0].mxu0 %v295
    %v385 = vpop.f32.mrb[0].mxu0
    %v386 = vadd.f32 0.0, %v385
    %v387 = vpop.f32.mrb[0].mxu0
    %388 = vmatprep.mubr.f32.mxu0 0.0
    %389 = vmatmul.mubr.f32.gmra.mrb[0].mxu0 %v298
    %v390 = vpop.f32.mrb[0].mxu0
    %v391 = vadd.f32 0.0, %v390
    %v392 = vpop.f32.mrb[0].mxu0
    %393 = vmatprep.mubr.f32.mxu0 0.0
    %394 = vmatmul.mubr.f32.gmra.mrb[0].mxu0 %v301
    %v395 = vpop.f32.mrb[0].mxu0
    %v396 = vadd.f32 0.0, %v395
    %v397 = vpop.f32.mrb[0].mxu0
    %398 = vmatprep.mubr.f32.mxu0 0.0
    %399 = vmatmul.mubr.f32.gmra.mrb[0].mxu0 %v304
    %v400 = vpop.f32.mrb[0].mxu0
    %v401 = vadd.f32 0.0, %v400
    %v402 = vpop.f32.mrb[0].mxu0
    %403 = vmatprep.mubr.f32.mxu0 0.0
    %404 = vmatmul.mubr.f32.gmra.mrb[0].mxu0 %v307
    %v405 = vpop.f32.mrb[0].mxu0
    %v406 = vadd.f32 0.0, %v405
    %v407 = vpop.f32.mrb[0].mxu0
    %408 = vmatprep.mubr.f32.mxu0 0.0
    %409 = vmatmul.mubr.f32.gmra.mrb[0].mxu0 %v310
    %v410 = vpop.f32.mrb[0].mxu0
    %v411 = vadd.f32 0.0, %v410
    %v412 = vpop.f32.mrb[0].mxu0
    %413 = vmatprep.mubr.f32.mxu0 0.0
    %414 = vmatmul.mubr.f32.gmra.mrb[0].mxu0 %v313
    %v415 = vpop.f32.mrb[0].mxu0
    %v416 = vadd.f32 0.0, %v415
    %v417 = vpop.f32.mrb[0].mxu0
    %418 = vdwg.mxu0
    %vm419 = vcmask 15360
    %v421 = vsel %vm419, %v279, 0
    %v424 = vsel %vm419, %v280, 0
    %v427 = vsel %vm419, %v281, 0
    %v430 = vsel %vm419, %v282, 0
    %v433 = vsel %vm419, %v283, 0
    %v436 = vsel %vm419, %v284, 0
    %v439 = vsel %vm419, %v285, 0
    %v442 = vsel %vm315, %v36, 0
    %444 = vmatprep.subr.mxu0 0.0
    %445 = vmatpush1.msra.mxu0 %v442
    %446 = vmatprep.subr.mxu0 0.0
    %447 = vmatpush1.msra.mxu0 0.0
    %448 = vmatprep.subr.mxu0 0.0
    %449 = vmatpush1.msra.mxu0 0.0
    %450 = vmatprep.subr.mxu0 0.0
    %451 = vmatpush1.msra.mxu0 0.0
    %452 = vmatprep.subr.mxu0 0.0
    %453 = vmatpush1.msra.mxu0 0.0
    %454 = vmatprep.subr.mxu0 0.0
    %455 = vmatpush1.msra.mxu0 0.0
    %456 = vmatprep.subr.mxu0 0.0
    %457 = vmatpush1.msra.mxu0 0.0
    %458 = vmatprep.subr.mxu0 0.0
    %459 = vmatpush1.msra.mxu0 0.0
    %460 = vmatprep.subr.mxu0 0.0
    %461 = vmatpush1.msra.mxu0 0.0
    %462 = vmatprep.subr.mxu0 0.0
    %463 = vmatpush1.msra.mxu0 0.0
    %464 = vmatprep.subr.mxu0 0.0
    %465 = vmatpush1.msra.mxu0 0.0
    %466 = vmatprep.subr.mxu0 0.0
    %467 = vmatpush1.msra.mxu0 0.0
    %468 = vmatprep.subr.mxu0 0.0
    %469 = vmatpush1.msra.mxu0 0.0
    %470 = vmatprep.subr.mxu0 0.0
    %471 = vmatpush1.msra.mxu0 0.0
    %472 = vmatprep.subr.mxu0 0.0
    %473 = vmatpush1.msra.mxu0 0.0
    %474 = vmatprep.subr.mxu0 0.0
    %475 = vmatpush1.msra.mxu0 0.0
    %476 = vmatprep.subr.mxu0 0.0
    %477 = vmatpush1.msra.mxu0 0.0
    %478 = vmatprep.subr.mxu0 0.0
    %479 = vmatpush1.msra.mxu0 0.0
    %480 = vmatprep.subr.mxu0 0.0
    %481 = vmatpush1.msra.mxu0 0.0
    %482 = vmatprep.subr.mxu0 0.0
    %483 = vmatpush1.msra.mxu0 0.0
    %484 = vmatprep.subr.mxu0 0.0
    %485 = vmatpush1.msra.mxu0 0.0
    %486 = vmatprep.subr.mxu0 0.0
    %487 = vmatpush1.msra.mxu0 0.0
    %488 = vmatprep.subr.mxu0 0.0
    %489 = vmatpush1.msra.mxu0 0.0
    %490 = vmatprep.subr.mxu0 0.0
    %491 = vmatpush1.msra.mxu0 0.0
    %492 = vmatprep.subr.mxu0 0.0
    %493 = vmatpush1.msra.mxu0 0.0
    %494 = vmatprep.subr.mxu0 0.0
    %495 = vmatpush1.msra.mxu0 0.0
    %496 = vmatprep.subr.mxu0 0.0
    %497 = vmatpush1.msra.mxu0 0.0
    %498 = vmatprep.subr.mxu0 0.0
    %499 = vmatpush1.msra.mxu0 0.0
    %500 = vmatprep.subr.mxu0 0.0
    %501 = vmatpush1.msra.mxu0 0.0
    %502 = vmatprep.subr.mxu0 0.0
    %503 = vmatpush1.msra.mxu0 0.0
    %504 = vmatprep.subr.mxu0 0.0
    %505 = vmatpush1.msra.mxu0 0.0
    %506 = vmatprep.subr.mxu0 0.0
    %507 = vmatpush1.msra.mxu0 0.0
    %508 = vmatprep.mubr.f32.mxu0 0.0
    %509 = vmatmul.mubr.f32.gmra.mrb[0].mxu0 %v421
    %v510 = vpop.f32.mrb[0].mxu0
    %v511 = vadd.f32 %v386, %v510
    %v512 = vpop.f32.mrb[0].mxu0
    %513 = vmatprep.mubr.f32.mxu0 0.0
    %514 = vmatmul.mubr.f32.gmra.mrb[0].mxu0 %v424
    %v515 = vpop.f32.mrb[0].mxu0
    %v516 = vadd.f32 %v391, %v515
    %v517 = vpop.f32.mrb[0].mxu0
    %518 = vmatprep.mubr.f32.mxu0 0.0
    %519 = vmatmul.mubr.f32.gmra.mrb[0].mxu0 %v427
    %v520 = vpop.f32.mrb[0].mxu0
    %v521 = vadd.f32 %v396, %v520
    %v522 = vpop.f32.mrb[0].mxu0
    %523 = vmatprep.mubr.f32.mxu0 0.0
    %524 = vmatmul.mubr.f32.gmra.mrb[0].mxu0 %v430
    %v525 = vpop.f32.mrb[0].mxu0
    %v526 = vadd.f32 %v401, %v525
    %v527 = vpop.f32.mrb[0].mxu0
    %528 = vmatprep.mubr.f32.mxu0 0.0
    %529 = vmatmul.mubr.f32.gmra.mrb[0].mxu0 %v433
    %v530 = vpop.f32.mrb[0].mxu0
    %v531 = vadd.f32 %v406, %v530
    %v532 = vpop.f32.mrb[0].mxu0
    %533 = vmatprep.mubr.f32.mxu0 0.0
    %534 = vmatmul.mubr.f32.gmra.mrb[0].mxu0 %v436
    %v535 = vpop.f32.mrb[0].mxu0
    %v536 = vadd.f32 %v411, %v535
    %v537 = vpop.f32.mrb[0].mxu0
    %538 = vmatprep.mubr.f32.mxu0 0.0
    %539 = vmatmul.mubr.f32.gmra.mrb[0].mxu0 %v439
    %v540 = vpop.f32.mrb[0].mxu0
    %v541 = vadd.f32 %v416, %v540
    %v542 = vpop.f32.mrb[0].mxu0
    %543 = vdwg.mxu0
    %v544 = vld [vmem:[%s5] sm:$0xff]
    %v545 = vld [vmem:[%s5 + $0x8] sm:$0xff]
    %v546 = vld [vmem:[%s5 + $0x10] sm:$0xff]
    %v547 = vld [vmem:[%s5 + $0x18] sm:$0xff]
    %v548 = vld [vmem:[%s5 + $0x20] sm:$0xff]
    %v549 = vld [vmem:[%s5 + $0x28] sm:$0xff]
    %v550 = vld [vmem:[%s5 + $0x30] sm:$0x3]
    %552 = vset.pattern.permute.xlu0 0
    %553 = vperm.xlu0 %552, %v544
    %v554 = vpop.permute.xlu0 %553
    %557 = vset.pattern.permute.xlu0 0
    %558 = vperm.xlu0 %557, %v545
    %v559 = vpop.permute.xlu0 %558
    %562 = vset.pattern.permute.xlu0 0
    %563 = vperm.xlu0 %562, %v546
    %v564 = vpop.permute.xlu0 %563
    %567 = vset.pattern.permute.xlu0 0
    %568 = vperm.xlu0 %567, %v547
    %v569 = vpop.permute.xlu0 %568
    %572 = vset.pattern.permute.xlu0 0
    %573 = vperm.xlu0 %572, %v548
    %v574 = vpop.permute.xlu0 %573
    %577 = vset.pattern.permute.xlu0 0
    %578 = vperm.xlu0 %577, %v549
    %v579 = vpop.permute.xlu0 %578
    %582 = vset.pattern.permute.xlu0 0
    %583 = vperm.xlu0 %582, %v550
    %v584 = vpop.permute.xlu0 %583
    %v586 = vadd.f32 %v511, %v554
    %v587 = vadd.f32 %v516, %v559
    %v588 = vadd.f32 %v521, %v564
    %v589 = vadd.f32 %v526, %v569
    %v590 = vadd.f32 %v531, %v574
    %v591 = vadd.f32 %v536, %v579
    %v592 = vadd.f32 %v541, %v584
    %v593 = vtanh.pop %v586
    %v594 = vtanh.pop %v587
    %v595 = vtanh.pop %v588
    %v596 = vtanh.pop %v589
    %v597 = vtanh.pop %v590
    %v598 = vtanh.pop %v591
    %v599 = vtanh.pop %v592
    %v600 = vld [vmem:[%s6] sm:$0xff]
    %v601 = vld [vmem:[%s6 + $0x8] sm:$0xff]
    %v602 = vld [vmem:[%s6 + $0x10] sm:$0xff]
    %v603 = vld [vmem:[%s6 + $0x18] sm:$0xff]
    %v604 = vld [vmem:[%s6 + $0x20] sm:$0xff]
    %v605 = vld [vmem:[%s6 + $0x28] sm:$0xff]
    %v606 = vld [vmem:[%s6 + $0x30] sm:$0x3]
    %v607 = vld [vmem:[%s7] sm:$0xff]
    %v608 = vld [vmem:[%s7 + $0x8] sm:$0xff]
    %v609 = vld [vmem:[%s7 + $0x10] sm:$0xff]
    %v610 = vld [vmem:[%s7 + $0x18] sm:$0xff]
    %v611 = vld [vmem:[%s7 + $0x20] sm:$0xff]
    %v612 = vld [vmem:[%s7 + $0x28] sm:$0xff]
    %v613 = vld [vmem:[%s7 + $0x30] sm:$0x3]
    %615 = vset.pattern.permute.xlu0 0
    %616 = vperm.xlu0 %615, %v607
    %v617 = vpop.permute.xlu0 %616
    %620 = vset.pattern.permute.xlu0 0
    %621 = vperm.xlu0 %620, %v608
    %v622 = vpop.permute.xlu0 %621
    %625 = vset.pattern.permute.xlu0 0
    %626 = vperm.xlu0 %625, %v609
    %v627 = vpop.permute.xlu0 %626
    %630 = vset.pattern.permute.xlu0 0
    %631 = vperm.xlu0 %630, %v610
    %v632 = vpop.permute.xlu0 %631
    %635 = vset.pattern.permute.xlu0 0
    %636 = vperm.xlu0 %635, %v611
    %v637 = vpop.permute.xlu0 %636
    %640 = vset.pattern.permute.xlu0 0
    %641 = vperm.xlu0 %640, %v612
    %v642 = vpop.permute.xlu0 %641
    %645 = vset.pattern.permute.xlu0 0
    %646 = vperm.xlu0 %645, %v613
    %v647 = vpop.permute.xlu0 %646
    %vm649 = vcmask 408576
    %v651 = vsel %vm649, %v600, 0
    %v654 = vsel %vm649, %v601, 0
    %v657 = vsel %vm649, %v602, 0
    %v660 = vsel %vm649, %v603, 0
    %v663 = vsel %vm649, %v604, 0
    %v666 = vsel %vm649, %v605, 0
    %v669 = vsel %vm649, %v606, 0
    %v672 = vsel %vm315, %v599, 0
    %674 = vmatprep.subr.mxu0 0.0
    %675 = vmatpush1.msra.mxu0 %v593
    %676 = vmatprep.subr.mxu0 0.0
    %677 = vmatpush1.msra.mxu0 %v594
    %678 = vmatprep.subr.mxu0 0.0
    %679 = vmatpush1.msra.mxu0 %v595
    %680 = vmatprep.subr.mxu0 0.0
    %681 = vmatpush1.msra.mxu0 %v596
    %682 = vmatprep.subr.mxu0 0.0
    %683 = vmatpush1.msra.mxu0 %v597
    %684 = vmatprep.subr.mxu0 0.0
    %685 = vmatpush1.msra.mxu0 %v598
    %686 = vmatprep.subr.mxu0 0.0
    %687 = vmatpush1.msra.mxu0 %v672
    %688 = vmatprep.subr.mxu0 0.0
    %689 = vmatpush1.msra.mxu0 0.0
    %690 = vmatprep.subr.mxu0 0.0
    %691 = vmatpush1.msra.mxu0 0.0
    %692 = vmatprep.subr.mxu0 0.0
    %693 = vmatpush1.msra.mxu0 0.0
    %694 = vmatprep.subr.mxu0 0.0
    %695 = vmatpush1.msra.mxu0 0.0
    %696 = vmatprep.subr.mxu0 0.0
    %697 = vmatpush1.msra.mxu0 0.0
    %698 = vmatprep.subr.mxu0 0.0
    %699 = vmatpush1.msra.mxu0 0.0
    %700 = vmatprep.subr.mxu0 0.0
    %701 = vmatpush1.msra.mxu0 0.0
    %702 = vmatprep.subr.mxu0 0.0
    %703 = vmatpush1.msra.mxu0 0.0
    %704 = vmatprep.subr.mxu0 0.0
    %705 = vmatpush1.msra.mxu0 0.0
    %706 = vmatprep.subr.mxu0 0.0
    %707 = vmatpush1.msra.mxu0 0.0
    %708 = vmatprep.subr.mxu0 0.0
    %709 = vmatpush1.msra.mxu0 0.0
    %710 = vmatprep.subr.mxu0 0.0
    %711 = vmatpush1.msra.mxu0 0.0
    %712 = vmatprep.subr.mxu0 0.0
    %713 = vmatpush1.msra.mxu0 0.0
    %714 = vmatprep.subr.mxu0 0.0
    %715 = vmatpush1.msra.mxu0 0.0
    %716 = vmatprep.subr.mxu0 0.0
    %717 = vmatpush1.msra.mxu0 0.0
    %718 = vmatprep.subr.mxu0 0.0
    %719 = vmatpush1.msra.mxu0 0.0
    %720 = vmatprep.subr.mxu0 0.0
    %721 = vmatpush1.msra.mxu0 0.0
    %722 = vmatprep.subr.mxu0 0.0
    %723 = vmatpush1.msra.mxu0 0.0
    %724 = vmatprep.subr.mxu0 0.0
    %725 = vmatpush1.msra.mxu0 0.0
    %726 = vmatprep.subr.mxu0 0.0
    %727 = vmatpush1.msra.mxu0 0.0
    %728 = vmatprep.subr.mxu0 0.0
    %729 = vmatpush1.msra.mxu0 0.0
    %730 = vmatprep.subr.mxu0 0.0
    %731 = vmatpush1.msra.mxu0 0.0
    %732 = vmatprep.subr.mxu0 0.0
    %733 = vmatpush1.msra.mxu0 0.0
    %734 = vmatprep.subr.mxu0 0.0
    %735 = vmatpush1.msra.mxu0 0.0
    %736 = vmatprep.subr.mxu0 0.0
    %737 = vmatpush1.msra.mxu0 0.0
    %738 = vmatprep.mubr.f32.mxu0 0.0
    %739 = vmatmul.mubr.f32.gmra.mrb[0].mxu0 %v651
    %v740 = vpop.f32.mrb[0].mxu0
    %v741 = vadd.f32 %v617, %v740
    %v742 = vpop.f32.mrb[0].mxu0
    %743 = vmatprep.mubr.f32.mxu0 0.0
    %744 = vmatmul.mubr.f32.gmra.mrb[0].mxu0 %v654
    %v745 = vpop.f32.mrb[0].mxu0
    %v746 = vadd.f32 %v622, %v745
    %v747 = vpop.f32.mrb[0].mxu0
    %748 = vmatprep.mubr.f32.mxu0 0.0
    %749 = vmatmul.mubr.f32.gmra.mrb[0].mxu0 %v657
    %v750 = vpop.f32.mrb[0].mxu0
    %v751 = vadd.f32 %v627, %v750
    %v752 = vpop.f32.mrb[0].mxu0
    %753 = vmatprep.mubr.f32.mxu0 0.0
    %754 = vmatmul.mubr.f32.gmra.mrb[0].mxu0 %v660
    %v755 = vpop.f32.mrb[0].mxu0
    %v756 = vadd.f32 %v632, %v755
    %v757 = vpop.f32.mrb[0].mxu0
    %758 = vmatprep.mubr.f32.mxu0 0.0
    %759 = vmatmul.mubr.f32.gmra.mrb[0].mxu0 %v663
    %v760 = vpop.f32.mrb[0].mxu0
    %v761 = vadd.f32 %v637, %v760
    %v762 = vpop.f32.mrb[0].mxu0
    %763 = vmatprep.mubr.f32.mxu0 0.0
    %764 = vmatmul.mubr.f32.gmra.mrb[0].mxu0 %v666
    %v765 = vpop.f32.mrb[0].mxu0
    %v766 = vadd.f32 %v642, %v765
    %v767 = vpop.f32.mrb[0].mxu0
    %768 = vmatprep.mubr.f32.mxu0 0.0
    %769 = vmatmul.mubr.f32.gmra.mrb[0].mxu0 %v669
    %v770 = vpop.f32.mrb[0].mxu0
    %v771 = vadd.f32 %v647, %v770
    %v772 = vpop.f32.mrb[0].mxu0
    %773 = vdwg.mxu0
    %v774 = vtanh.pop %v741
    %v775 = vtanh.pop %v746
    %v776 = vtanh.pop %v751
    %v777 = vtanh.pop %v756
    %v778 = vtanh.pop %v761
    %v779 = vtanh.pop %v766
    %v780 = vtanh.pop %v771
    %v781 = vld [vmem:[%s8] sm:$0x3]
    %v782 = vld [vmem:[%s9] sm:$0x3]
    %784 = vset.pattern.permute.xlu0 0
    %785 = vperm.xlu0 %784, %v782
    %v786 = vpop.permute.xlu0 %785
    %v789 = vsel %vm649, %v781, 0
    %v792 = vsel %vm315, %v780, 0
    %794 = vmatprep.subr.mxu0 0.0
    %795 = vmatpush1.msra.mxu0 %v774
    %796 = vmatprep.subr.mxu0 0.0
    %797 = vmatpush1.msra.mxu0 %v775
    %798 = vmatprep.subr.mxu0 0.0
    %799 = vmatpush1.msra.mxu0 %v776
    %800 = vmatprep.subr.mxu0 0.0
    %801 = vmatpush1.msra.mxu0 %v777
    %802 = vmatprep.subr.mxu0 0.0
    %803 = vmatpush1.msra.mxu0 %v778
    %804 = vmatprep.subr.mxu0 0.0
    %805 = vmatpush1.msra.mxu0 %v779
    %806 = vmatprep.subr.mxu0 0.0
    %807 = vmatpush1.msra.mxu0 %v792
    %808 = vmatprep.subr.mxu0 0.0
    %809 = vmatpush1.msra.mxu0 0.0
    %810 = vmatprep.subr.mxu0 0.0
    %811 = vmatpush1.msra.mxu0 0.0
    %812 = vmatprep.subr.mxu0 0.0
    %813 = vmatpush1.msra.mxu0 0.0
    %814 = vmatprep.subr.mxu0 0.0
    %815 = vmatpush1.msra.mxu0 0.0
    %816 = vmatprep.subr.mxu0 0.0
    %817 = vmatpush1.msra.mxu0 0.0
    %818 = vmatprep.subr.mxu0 0.0
    %819 = vmatpush1.msra.mxu0 0.0
    %820 = vmatprep.subr.mxu0 0.0
    %821 = vmatpush1.msra.mxu0 0.0
    %822 = vmatprep.subr.mxu0 0.0
    %823 = vmatpush1.msra.mxu0 0.0
    %824 = vmatprep.subr.mxu0 0.0
    %825 = vmatpush1.msra.mxu0 0.0
    %826 = vmatprep.subr.mxu0 0.0
    %827 = vmatpush1.msra.mxu0 0.0
    %828 = vmatprep.subr.mxu0 0.0
    %829 = vmatpush1.msra.mxu0 0.0
    %830 = vmatprep.subr.mxu0 0.0
    %831 = vmatpush1.msra.mxu0 0.0
    %832 = vmatprep.subr.mxu0 0.0
    %833 = vmatpush1.msra.mxu0 0.0
    %834 = vmatprep.subr.mxu0 0.0
    %835 = vmatpush1.msra.mxu0 0.0
    %836 = vmatprep.subr.mxu0 0.0
    %837 = vmatpush1.msra.mxu0 0.0
    %838 = vmatprep.subr.mxu0 0.0
    %839 = vmatpush1.msra.mxu0 0.0
    %840 = vmatprep.subr.mxu0 0.0
    %841 = vmatpush1.msra.mxu0 0.0
    %842 = vmatprep.subr.mxu0 0.0
    %843 = vmatpush1.msra.mxu0 0.0
    %844 = vmatprep.subr.mxu0 0.0
    %845 = vmatpush1.msra.mxu0 0.0
    %846 = vmatprep.subr.mxu0 0.0
    %847 = vmatpush1.msra.mxu0 0.0
    %848 = vmatprep.subr.mxu0 0.0
    %849 = vmatpush1.msra.mxu0 0.0
    %850 = vmatprep.subr.mxu0 0.0
    %851 = vmatpush1.msra.mxu0 0.0
    %852 = vmatprep.subr.mxu0 0.0
    %853 = vmatpush1.msra.mxu0 0.0
    %854 = vmatprep.subr.mxu0 0.0
    %855 = vmatpush1.msra.mxu0 0.0
    %856 = vmatprep.subr.mxu0 0.0
    %857 = vmatpush1.msra.mxu0 0.0
    %858 = vmatprep.mubr.f32.mxu0 0.0
    %859 = vmatmul.mubr.f32.gmra.mrb[0].mxu0 %v789
    %v860 = vpop.f32.mrb[0].mxu0
    %v861 = vadd.f32 %v786, %v860
    %v862 = vpop.f32.mrb[0].mxu0
    %863 = vdwg.mxu0
    %v864 = vmul.f32 %v36, 6.437752
    %v865 = vmul.f32 %v864, 1.442695
    %v866 = vpow.pop %v865
    %v867 = vsub.f32 %v866, 1.0
    %v868 = vmul.f32 %v867, 0.15533373
    %v869 = vrsqrt.pop %v868
    %v870 = vlaneseq
    %v871 = vshrl.u32 %v870, 7
    %v872 = vsub.s32 2, %v871
    %v873 = vrot.slane %v869, %v872
    %v874 = vmul.f32 %v861, %v873
    %875 = vst [vmem:[#allocation2] sm:$0x3] %v874
    // Predicated region
    $region42: #{tpu_custom_call.1} parent=1 // pred_check
      _
    $region43: #{tpu_custom_call.1} parent=1 // pred_check_branch
      %877 = sbr.rel (0) target = $region45
    $region44: #{tpu_custom_call.1} parent=1 // pred_region
      %s879 = ssub.s32 32, 32
      %880 = vsyncadd [#allocation3], %s879
      %s882 = sshll.u32 [#allocation2], 4
      %s883 = int_to_ptr.vmem [resolvable:$true] %s882
      %885 = dma.vmem_to_hbm [thread:$0]  %s883, 32, %s10, [#allocation3]
    $region45: #{tpu_custom_call.1} parent=1 // pred_fallthru
      _
    // Predicated region
    $region46: #{tpu_custom_call.1} parent=1 // pred_check
      _
    $region47: #{tpu_custom_call.1} parent=1 // pred_check_branch
      %887 = sbr.rel (0) target = $region49
    $region48: #{tpu_custom_call.1} parent=1 // pred_region
      %888 = dma.done [#allocation3], 32
    $region49: #{tpu_custom_call.1} parent=1 // pred_fallthru
      _
    %889 = vsyncpa [#allocation3], 1

</llo_original>
